<compile_context>
chip_gen: v5e
topology: v5e:2x2
jax: 0.10.0
libtpu: 0.0.40
codegen_flags: <defaults>
</compile_context>

<pallas_src>
import math

import jax
import jax.numpy as jnp
from jax.experimental import pallas as pl
from jax.experimental.pallas import tpu as pltpu


def _layer_scale_kernel(x_ref, gamma_ref, o_ref):
    # (tile_rows, tile_d) * (1, tile_d): VPU broadcast multiply.  The multiply
    # promotes (e.g. bf16 * f32 -> f32) and is then cast to the output dtype,
    # matching `x * self.gamma` semantics for the default out_dtype.
    o_ref[...] = (x_ref[...] * gamma_ref[...]).astype(o_ref.dtype)


def _sublane_multiple(*dtypes) -> int:
    """Native sublane packing multiple for the narrowest dtype involved."""
    m = 8
    for dt in dtypes:
        isz = jnp.dtype(dt).itemsize
        if isz == 2:
            m = max(m, 16)
        elif isz == 1:
            m = max(m, 32)
    return m


def layer_scale(x: jax.Array, gamma: jax.Array, *, out_dtype=None,
                inplace: bool = False) -> jax.Array:
    """y = x * gamma along the last axis, as a Pallas TPU kernel.

    x: [..., D], gamma: [D].
    out_dtype=None -> PyTorch promotion (result_type(x, gamma)); pass
    out_dtype=x.dtype (e.g. bf16) to keep the output narrow and cut HBM bytes.
    """
    orig_shape = x.shape
    d = orig_shape[-1]
    assert gamma.shape == (d,), f"gamma must have shape ({d},), got {gamma.shape}"

    if out_dtype is None:
        out_dtype = jnp.result_type(x.dtype, gamma.dtype)
    out_dtype = jnp.dtype(out_dtype)

    # Degenerate empty input: nothing to do.
    if x.size == 0:
        return x.astype(out_dtype)

    rows = 1
    for s in orig_shape[:-1]:
        rows *= s

    x2 = x.reshape(rows, d)
    g2 = gamma.reshape(1, d)

    # ---- Lane-density folding -------------------------------------------
    # If D is not a multiple of 128, fold rows into lanes so stores are full
    # 128-lane vst rather than masked partial stores.  gamma's broadcast is
    # periodic in D, so tiling it keeps exact semantics.  Contiguous reshape
    # is free (same buffer).
    rows_eff, d_eff = rows, d
    if d % 128 != 0 and rows > 1:
        lane_len = math.lcm(d, 128)
        reps = lane_len // d
        if reps > 1 and rows % reps == 0:
            rows_eff = rows // reps
            d_eff = lane_len
            x2 = x2.reshape(rows_eff, d_eff)
            g2 = jnp.tile(g2, (1, reps))   # small (1, lane_len) array
    # (If rows % reps != 0 we fall back to the correct masked-store path.)

    x_item = jnp.dtype(x.dtype).itemsize
    out_item = out_dtype.itemsize
    elem_bytes = x_item + out_item
    sub = _sublane_multiple(x.dtype, out_dtype)

    # ---- Block sizing -----------------------------------------------------
    # Target ~10 MiB of combined in+out bytes per step; double-buffered VMEM
    # footprint ~20 MiB, under the 32 MiB scoped limit requested below.
    target = 10 << 20
    if d_eff * elem_bytes * sub > target:
        # Very large hidden size: tile the lane axis too (multiple of 128;
        # ragged tail is masked by Pallas).
        tile_d = max(128, (target // (sub * elem_bytes)) // 128 * 128)
        if tile_d >= d_eff:
            tile_d = d_eff
    else:
        tile_d = d_eff
    tile_rows = max(sub, (target // (tile_d * elem_bytes)) // sub * sub)
    if tile_rows >= rows_eff:
        tile_rows = rows_eff   # full first dim is always a legal block

    # Grid: D-blocks OUTER, row-blocks INNER.  gamma's block index depends
    # only on the outer axis, so Pallas keeps it resident across the whole
    # inner loop (no redundant gamma re-DMA).  Ragged tails on either axis
    # are masked by Pallas -- no host-side padding or slicing.
    grid = (pl.cdiv(d_eff, tile_d), pl.cdiv(rows_eff, tile_rows))

    io_aliases = {}
    if inplace and out_dtype == jnp.dtype(x.dtype):
        # Reuse x's buffer for the output (x2 is a free reshape of the same
        # buffer); forward semantics are unchanged.
        io_aliases = {0: 0}

    out = pl.pallas_call(
        _layer_scale_kernel,
        out_shape=jax.ShapeDtypeStruct((rows_eff, d_eff), out_dtype),
        grid_spec=pltpu.PrefetchScalarGridSpec(
            num_scalar_prefetch=0,
            grid=grid,
            in_specs=[
                pl.BlockSpec((tile_rows, tile_d), lambda j, i: (i, j)),
                pl.BlockSpec((1, tile_d), lambda j, i: (0, j)),
            ],
            out_specs=pl.BlockSpec((tile_rows, tile_d), lambda j, i: (i, j)),
        ),
        compiler_params=pltpu.CompilerParams(
            # Both axes independent.  (v7x follow-up: CORE_PARALLEL on the
            # row axis to guarantee both TensorCores stream; kept portable
            # here.)
            dimension_semantics=("parallel", "parallel"),
            vmem_limit_bytes=32 * 1024 * 1024,
        ),
        input_output_aliases=io_aliases,
    )(x2, g2)

    return out.reshape(orig_shape)


class LayerScale:
    """JAX/Pallas equivalent of the PyTorch LayerScale module."""

    def __init__(self, dim: int, init_values: float = 1e-5, inplace: bool = False,
                 param_dtype=jnp.float32, out_dtype=None):
        # Matches nn.Parameter(init_values * torch.ones(dim)).
        self.gamma = init_values * jnp.ones((dim,), dtype=param_dtype)
        # JAX arrays are immutable; inplace=True keeps identical forward
        # semantics and enables output-buffer aliasing when dtypes match.
        self.inplace = inplace
        # out_dtype=None -> PyTorch promotion; set e.g. jnp.bfloat16 to keep
        # bf16 activations narrow (opt-in deviation, saves ~33% HBM traffic).
        self.out_dtype = out_dtype

    def __call__(self, x: jax.Array) -> jax.Array:
        return layer_scale(x, self.gamma, out_dtype=self.out_dtype,
                           inplace=self.inplace)


if __name__ == "__main__":
    key = jax.random.PRNGKey(0)
    batch, seq, hidden = 2, 8, 32

    # 1) f32 activations, default PyTorch-promotion semantics (fold path:
    #    D=32 -> lane-dense 128-wide rows).
    x = jax.random.normal(key, (batch, seq, hidden), dtype=jnp.float32)
    module = LayerScale(dim=hidden, init_values=1e-5)
    y = jax.block_until_ready(module(x))
    assert y.shape == x.shape and y.dtype == jnp.float32
    assert jnp.allclose(y, x * module.gamma, rtol=1e-6, atol=1e-6)

    # 2) bf16 activations with opt-in bf16 output (narrow write stream).
    xb = x.astype(jnp.bfloat16)
    module_b = LayerScale(dim=hidden, init_values=1e-5, out_dtype=jnp.bfloat16)
    yb = jax.block_until_ready(module_b(xb))
    assert yb.shape == xb.shape and yb.dtype == jnp.bfloat16
    ref_b = (xb.astype(jnp.float32) * module_b.gamma).astype(jnp.bfloat16)
    assert jnp.allclose(yb.astype(jnp.float32), ref_b.astype(jnp.float32),
                        rtol=1e-2, atol=1e-5)

    # 3) D >= 128 but not a multiple of 128 (generalized lane folding).
    x3 = jax.random.normal(jax.random.PRNGKey(1), (batch, seq, 160),
                           dtype=jnp.float32)
    module3 = LayerScale(dim=160, init_values=1e-5)
    y3 = jax.block_until_ready(module3(x3))
    assert jnp.allclose(y3, x3 * module3.gamma, rtol=1e-6, atol=1e-6)

    print("KERNEL_OK")
</pallas_src>

<mosaic_0001>
module attributes {stable_mosaic.version = 11 : i64} {
  func.func @_layer_scale_kernel(%arg0: i32, %arg1: i32, %arg2: memref<4x128xf32, #tpu.memory_space<vmem>>, %arg3: memref<1x128xf32, #tpu.memory_space<vmem>>, %arg4: memref<4x128xf32, #tpu.memory_space<vmem>>) attributes {dimension_semantics = [#tpu.dimension_semantics<parallel>, #tpu.dimension_semantics<parallel>], iteration_bounds = array<i64: 1, 1>, scalar_prefetch = 0 : i64, scratch_operands = 0 : i64, tpu.core_type = #tpu.core_type<tc>, window_params = [{transform_indices = @transform_0, window_bounds = array<i64: 4, 128>}, {transform_indices = @transform_1, window_bounds = array<i64: 1, 128>}, {transform_indices = @transform_2, window_bounds = array<i64: 4, 128>}]} {
    %c0 = arith.constant 0 : index
    %c0_0 = arith.constant 0 : index
    %0 = vector.load %arg2[%c0, %c0_0] : memref<4x128xf32, #tpu.memory_space<vmem>>, vector<4x128xf32>
    %c0_1 = arith.constant 0 : index
    %c0_2 = arith.constant 0 : index
    %1 = vector.load %arg3[%c0_1, %c0_2] : memref<1x128xf32, #tpu.memory_space<vmem>>, vector<1x128xf32>
    %2 = vector.broadcast %1 : vector<1x128xf32> to vector<4x128xf32>
    %3 = arith.mulf %0, %2 : vector<4x128xf32>
    %c0_3 = arith.constant 0 : index
    %c0_4 = arith.constant 0 : index
    %4 = vector.load %arg4[%c0_3, %c0_4] : memref<4x128xf32, #tpu.memory_space<vmem>>, vector<4x128xf32>
    tpu.vector_store %arg4[%c0_3, %c0_4], %3 {strides = array<i32>} : memref<4x128xf32, #tpu.memory_space<vmem>>, vector<4x128xf32>,
    return
  }
  func.func @transform_0(%arg0: i32, %arg1: i32) -> (i32, i32) {
    %c0_i32 = arith.constant 0 : i32
    return %arg1, %arg0 : i32, i32
  }
  func.func @transform_1(%arg0: i32, %arg1: i32) -> (i32, i32) {
    %c0_i32 = arith.constant 0 : i32
    %c0_i32_0 = arith.constant 0 : i32
    return %c0_i32, %arg0 : i32, i32
  }
  func.func @transform_2(%arg0: i32, %arg1: i32) -> (i32, i32) {
    %c0_i32 = arith.constant 0 : i32
    return %arg1, %arg0 : i32, i32
  }
}

</mosaic_0001>

<llo_original>
// kernel: tpu_custom_call.1
$region0: #{tpu_custom_call.1}
  #allocation0 [shape = 'u32[]', space=smem, size = 0x4, offset = 0x4, fixed_abs, tag = 'smem constant byte address 0x4 - core index']
  #allocation1 [shape = 'u32[72,128]{1,0:T(1,128)}', space=vmem, size = 0x9000, scoped, tag = 'internal scratch']
  %s0 = inlined_call_operand.hbm [shape: f32[4,128], index: 0, kind: input, shape index: {}]
  %s1 = inlined_call_operand.hbm [shape: f32[1,128], index: 1, kind: input, shape index: {}]
  %s2 = inlined_call_operand.hbm [shape: f32[4,128], index: 2, kind: output, shape index: {}]
  %s3 = sld [smem:[#allocation0]]
  $region26: #{tpu_custom_call.1} parent=0
    _
  %s5 = ssub.s32 1, %s3
  %s6 = scalar_select 0, %s5, %s3
  $region1: #{tpu_custom_call.1} parent=0
    #allocation2 [shape = 'u8[2048]{0}', space=vmem, size = 0x800, scoped, tag = 'input window, operand 0, single buffered']
    #allocation3 [shape = 's32[1]{0}', space=sflag, size = 0x4, scoped, tag = 'scoped memory for tpu_custom_call.1']
    #allocation4 [shape = 's32[1]{0}', space=sflag, size = 0x4, scoped, tag = 'scoped memory for tpu_custom_call.1']
    #allocation5 [shape = 'u8[512]{0}', space=vmem, size = 0x400, scoped, tag = 'input window, operand 1, single buffered']
    #allocation6 [shape = 's32[1]{0}', space=sflag, size = 0x4, scoped, tag = 'scoped memory for tpu_custom_call.1']
    #allocation7 [shape = 'u8[2048]{0}', space=vmem, size = 0x800, scoped, tag = 'output window, operand 0, single buffered']
    %7 = vsyncpa [#allocation3], 0
    %8 = vsyncpa [#allocation6], 0
    %9 = vsyncpa [#allocation4], 0
    // Predicated region
    $region2: #{tpu_custom_call.1} parent=1 // pred_check
      _
    $region3: #{tpu_custom_call.1} parent=1 // pred_check_branch
      %11 = sbr.rel (0) target = $region5
    $region4: #{tpu_custom_call.1} parent=1 // pred_region
      %13 = vsyncadd [#allocation3], 0
      %s15 = sshll.u32 %s0, 4
      %s16 = int_to_ptr.hbm [resolvable:$true] %s15
      %s17 = sshll.u32 [#allocation2], 4
      %s18 = int_to_ptr.vmem [resolvable:$true] %s17
      %20 = dma.hbm_to_vmem [thread:$0]  %s16, 64, %s18, [#allocation3]
    $region5: #{tpu_custom_call.1} parent=1 // pred_fallthru
      _
    // Predicated region
    $region6: #{tpu_custom_call.1} parent=1 // pred_check
      _
    $region7: #{tpu_custom_call.1} parent=1 // pred_check_branch
      %22 = sbr.rel (0) target = $region9
    $region8: #{tpu_custom_call.1} parent=1 // pred_region
      %24 = vsyncadd [#allocation6], 0
      %s26 = sshll.u32 %s1, 4
      %s27 = int_to_ptr.hbm [resolvable:$true] %s26
      %s28 = sshll.u32 [#allocation5], 4
      %s29 = int_to_ptr.vmem [resolvable:$true] %s28
      %31 = dma.hbm_to_vmem [thread:$0]  %s27, 16, %s29, [#allocation6]
    $region9: #{tpu_custom_call.1} parent=1 // pred_fallthru
      _
    // Predicated region
    $region10: #{tpu_custom_call.1} parent=1 // pred_check
      _
    $region11: #{tpu_custom_call.1} parent=1 // pred_check_branch
      %33 = sbr.rel (0) target = $region13
    $region12: #{tpu_custom_call.1} parent=1 // pred_region
      %35 = dma.done [#allocation3], 64
    $region13: #{tpu_custom_call.1} parent=1 // pred_fallthru
      _
    // Predicated region
    $region14: #{tpu_custom_call.1} parent=1 // pred_check
      _
    $region15: #{tpu_custom_call.1} parent=1 // pred_check_branch
      %37 = sbr.rel (0) target = $region17
    $region16: #{tpu_custom_call.1} parent=1 // pred_region
      %39 = dma.done [#allocation6], 16
    $region17: #{tpu_custom_call.1} parent=1 // pred_fallthru
      _
    %v40 = vld [vmem:[#allocation2] sm:$0xf]
    %v41 = vld [vmem:[#allocation5] sm:$0x1]
    %v43 = vperm.slane %v41, 0
    %v45 = vmul.f32 %v40, %v43
    %46 = vst [vmem:[#allocation7] sm:$0xf] %v45
    // Predicated region
    $region18: #{tpu_custom_call.1} parent=1 // pred_check
      _
    $region19: #{tpu_custom_call.1} parent=1 // pred_check_branch
      %48 = sbr.rel (0) target = $region21
    $region20: #{tpu_custom_call.1} parent=1 // pred_region
      %50 = vsyncadd [#allocation4], 0
      %s52 = sshll.u32 [#allocation7], 4
      %s53 = int_to_ptr.vmem [resolvable:$true] %s52
      %s54 = sshll.u32 %s2, 4
      %s55 = int_to_ptr.hbm [resolvable:$true] %s54
      %57 = dma.vmem_to_hbm [thread:$0]  %s53, 64, %s55, [#allocation4]
    $region21: #{tpu_custom_call.1} parent=1 // pred_fallthru
      _
    // Predicated region
    $region22: #{tpu_custom_call.1} parent=1 // pred_check
      _
    $region23: #{tpu_custom_call.1} parent=1 // pred_check_branch
      %59 = sbr.rel (0) target = $region25
    $region24: #{tpu_custom_call.1} parent=1 // pred_region
      %61 = dma.done [#allocation4], 64
    $region25: #{tpu_custom_call.1} parent=1 // pred_fallthru
      _
    %62 = vsyncpa [#allocation3], 1
    %63 = vsyncpa [#allocation6], 1
    %64 = vsyncpa [#allocation4], 1

</llo_original>
